<compile_context>
chip_gen: v7x
topology: tpu7x:2x2x1
jax: 0.10.0
libtpu: 0.0.40
codegen_flags: <defaults>
</compile_context>

<pallas_src>
import jax
import jax.numpy as jnp
from jax.experimental import pallas as pl
from jax.experimental.pallas import tpu as pltpu

_LANE_FOLD = 128  # batch samples folded onto the lane axis per row


def _cdiv(a, b):
    return (a + b - 1) // b


def _round_up(x, m):
    return ((x + m - 1) // m) * m


def _l1_foldsum_kernel(x_ref, y_ref, out_ref):
    """Accumulate per-lane sums of |x - y| over the sublane (folded-batch) axis.

    x_ref / y_ref: (TR, 128*D) tiles; each row packs 128 consecutive batch
                   samples, so lanes are fully dense and columns repeat the D
                   pose dims with period D.
    out_ref:       (1, 1, 128*D) partial-sum block, resident across the
                   reduction grid axis (same block index every step).
    """
    @pl.when(pl.program_id(1) == 0)
    def _():
        out_ref[...] = jnp.zeros_like(out_ref)

    # f32 compute is required on v5e (no bf16 VPU) and is safe everywhere.
    diff = jnp.abs(x_ref[...].astype(jnp.float32) - y_ref[...].astype(jnp.float32))
    out_ref[...] += jnp.sum(diff, axis=0, keepdims=True)[None]  # (1, 1, W)


def l1_column_sums(pred, target, *, max_tile_rows=512, num_parallel=2):
    """Returns sum_b |pred[b, d] - target[b, d]| as a (D,) float32 vector."""
    assert pred.shape == target.shape and pred.ndim == 2
    B, D = pred.shape
    W = _LANE_FOLD * D                         # lanes per folded row (multiple of 128)
    R = _cdiv(B, _LANE_FOLD)                   # folded rows holding real data
    TR = min(max_tile_rows, _round_up(_cdiv(R, num_parallel), 8))
    R_padded = _round_up(R, TR * num_parallel)
    steps = R_padded // (TR * num_parallel)
    n_elems = R_padded * W

    def fold(a):
        # Row-major (B, D) -> flat is a no-op view; pad is a contiguous copy.
        flat = jnp.pad(a.reshape(-1), (0, n_elems - B * D))
        return flat.reshape(R_padded, W)

    x = fold(pred)
    y = fold(target)

    in_map = lambda p, i: (p * steps + i, 0)  # noqa: E731
    itemsize = jnp.dtype(x.dtype).itemsize

    partials = pl.pallas_call(
        _l1_foldsum_kernel,
        out_shape=jax.ShapeDtypeStruct((num_parallel, 1, W), jnp.float32),
        grid_spec=pl.GridSpec(
            grid=(num_parallel, steps),
            in_specs=[
                pl.BlockSpec((TR, W), in_map),
                pl.BlockSpec((TR, W), in_map),
            ],
            out_specs=pl.BlockSpec((1, 1, W), lambda p, i: (p, 0, 0)),
        ),
        compiler_params=pltpu.CompilerParams(
            dimension_semantics=("parallel", "arbitrary")),
        cost_estimate=pl.CostEstimate(
            flops=3 * n_elems,
            transcendentals=0,
            bytes_accessed=2 * n_elems * itemsize + num_parallel * W * 4),
    )(x, y)

    folded = jnp.sum(partials[:, 0, :], axis=0)            # (W,)  combine cores
    return jnp.sum(folded.reshape(_LANE_FOLD, D), axis=0)  # (D,)  un-fold batch groups


@jax.jit
def _pose_metric_stats_pallas(pred, target):
    """Returns [col_mean_0, ..., col_mean_{D-1}, pose_error] as one vector."""
    B, D = pred.shape
    col_sums = l1_column_sums(pred, target)        # (D,) f32
    col_means = col_sums / B
    pose_error = jnp.sum(col_sums) / (B * D)
    return jnp.concatenate([col_means, pose_error[None]])


@jax.jit
def _pose_metric_stats_xla(pred, target):
    """Plain-XLA fallback: avoids custom-call launch overhead at tiny B*D."""
    col_means = jnp.mean(
        jnp.abs(pred.astype(jnp.float32) - target.astype(jnp.float32)), axis=0)
    return jnp.concatenate([col_means, jnp.mean(col_means)[None]])


class PoseMetric:
    """JAX/Pallas re-implementation of the PyTorch PoseMetric module."""

    def __init__(self, num_cubes=3, use_pallas=True):
        self.num_cubes = num_cubes
        # The Pallas path is meant for large batched evaluation; the fused-XLA
        # path is kept switchable for tiny batches.
        self.use_pallas = use_pallas

    def __call__(self, pred, target):
        stats_fn = _pose_metric_stats_pallas if self.use_pallas else _pose_metric_stats_xla
        # Single device->host transfer for ALL logged scalars.
        stats = jax.device_get(stats_fn(pred, target))
        col_means = stats[:-1]
        pose_error = float(stats[-1])

        log_error = {'pose_error': pose_error * 100}
        for i in range(self.num_cubes):
            # cube_error is computed in the reference but never logged
            # (the module logs x_error under 'error_cube{i}'); replicate that.
            cube_error = float(col_means[0 + i * 3:3 + i * 3].mean())  # noqa: F841
            x_error = float(col_means[0 + i * 3])
            y_error = float(col_means[1 + i * 3])
            z_error = float(col_means[2 + i * 3])
            log_error[f'error_cube{i}'] = x_error * 100
            log_error[f'x_error_cube{i}'] = x_error * 100
            log_error[f'y_error_cube{i}'] = y_error * 100
            log_error[f'z_error_cube{i}'] = z_error * 100
        return log_error


if __name__ == "__main__":
    num_cubes = 3
    D = num_cubes * 3  # flattened cube xyz columns, matches pred[:, i*3:i*3+3]

    key = jax.random.PRNGKey(0)
    metric = PoseMetric(num_cubes=num_cubes, use_pallas=True)

    # Small shapes consistent with the module; the second exercises the
    # batch-padding / folding path (B not a multiple of 128).
    for B in (8, 300):
        kp, kt = jax.random.split(jax.random.fold_in(key, B))
        pred = jax.random.normal(kp, (B, D), dtype=jnp.float32)
        target = jax.random.normal(kt, (B, D), dtype=jnp.float32)

        log_error = metric(pred, target)

        # Sanity check against a pure-JAX reference.
        ref_cols = jnp.mean(jnp.abs(pred - target), axis=0)
        ref_pose = float(jnp.mean(ref_cols)) * 100
        assert abs(log_error['pose_error'] - ref_pose) < 1e-3, (
            log_error['pose_error'], ref_pose)
        for i in range(num_cubes):
            assert abs(log_error[f'x_error_cube{i}'] - float(ref_cols[i * 3 + 0]) * 100) < 1e-3
            assert abs(log_error[f'y_error_cube{i}'] - float(ref_cols[i * 3 + 1]) * 100) < 1e-3
            assert abs(log_error[f'z_error_cube{i}'] - float(ref_cols[i * 3 + 2]) * 100) < 1e-3
            assert abs(log_error[f'error_cube{i}'] - log_error[f'x_error_cube{i}']) < 1e-9

    # Explicitly block on a final kernel invocation.
    jax.block_until_ready(_pose_metric_stats_pallas(pred, target))
    print("KERNEL_OK")
</pallas_src>

<mosaic_0001>
module attributes {stable_mosaic.version = 11 : i64} {
  func.func @_l1_foldsum_kernel(%arg0: i32, %arg1: i32, %arg2: memref<8x1152xf32, #tpu.memory_space<vmem>>, %arg3: memref<8x1152xf32, #tpu.memory_space<vmem>>, %arg4: memref<1x1x1152xf32, #tpu.memory_space<vmem>>) attributes {dimension_semantics = [#tpu.dimension_semantics<parallel>, #tpu.dimension_semantics<arbitrary>], iteration_bounds = array<i64: 2, 1>, scalar_prefetch = 0 : i64, scratch_operands = 0 : i64, tpu.core_type = #tpu.core_type<tc>, window_params = [{transform_indices = @transform_0, window_bounds = array<i64: 8, 1152>}, {transform_indices = @transform_1, window_bounds = array<i64: 8, 1152>}, {transform_indices = @transform_2, window_bounds = array<i64: 1, 1, 1152>}]} {
    %c0_i32 = arith.constant 0 : i32
    %0 = arith.cmpi eq, %arg1, %c0_i32 : i32
    %1 = arith.extui %0 : i1 to i32
    %c0_i32_0 = arith.constant 0 : i32
    %2 = arith.cmpi ne, %1, %c0_i32_0 : i32
    scf.if %2 {
      %cst_10 = arith.constant 0.000000e+00 : f32
      %13 = vector.broadcast %cst_10 : f32 to vector<1x1x1152xf32>
      %c0_11 = arith.constant 0 : index
      %c0_12 = arith.constant 0 : index
      %c0_13 = arith.constant 0 : index
      %14 = vector.load %arg4[%c0_11, %c0_12, %c0_13] : memref<1x1x1152xf32, #tpu.memory_space<vmem>>, vector<1x1x1152xf32>
      tpu.vector_store %arg4[%c0_11, %c0_12, %c0_13], %13 {strides = array<i32>} : memref<1x1x1152xf32, #tpu.memory_space<vmem>>, vector<1x1x1152xf32>,
    } else {
    }
    %c0 = arith.constant 0 : index
    %c0_1 = arith.constant 0 : index
    %3 = vector.load %arg2[%c0, %c0_1] : memref<8x1152xf32, #tpu.memory_space<vmem>>, vector<8x1152xf32>
    %c0_2 = arith.constant 0 : index
    %c0_3 = arith.constant 0 : index
    %4 = vector.load %arg3[%c0_2, %c0_3] : memref<8x1152xf32, #tpu.memory_space<vmem>>, vector<8x1152xf32>
    %5 = arith.subf %3, %4 : vector<8x1152xf32>
    %6 = math.absf %5 : vector<8x1152xf32>
    %c0_4 = arith.constant 0 : index
    %c0_5 = arith.constant 0 : index
    %c0_6 = arith.constant 0 : index
    %7 = vector.load %arg4[%c0_4, %c0_5, %c0_6] : memref<1x1x1152xf32, #tpu.memory_space<vmem>>, vector<1x1x1152xf32>
    %cst = arith.constant dense<0.000000e+00> : vector<1152xf32>
    %8 = vector.multi_reduction <add>, %6, %cst [0] : vector<8x1152xf32> to vector<1152xf32>
    %9 = vector.shape_cast %8 : vector<1152xf32> to vector<1x1152xf32>
    %10 = vector.shape_cast %9 : vector<1x1152xf32> to vector<1x1x1152xf32>
    %11 = arith.addf %7, %10 : vector<1x1x1152xf32>
    %c0_7 = arith.constant 0 : index
    %c0_8 = arith.constant 0 : index
    %c0_9 = arith.constant 0 : index
    %12 = vector.load %arg4[%c0_7, %c0_8, %c0_9] : memref<1x1x1152xf32, #tpu.memory_space<vmem>>, vector<1x1x1152xf32>
    tpu.vector_store %arg4[%c0_7, %c0_8, %c0_9], %11 {strides = array<i32>} : memref<1x1x1152xf32, #tpu.memory_space<vmem>>, vector<1x1x1152xf32>,
    return
  }
  func.func @transform_0(%arg0: i32, %arg1: i32) -> (i32, i32) {
    %c1_i32 = arith.constant 1 : i32
    %0 = arith.muli %arg0, %c1_i32 : i32
    %1 = arith.addi %0, %arg1 : i32
    %c0_i32 = arith.constant 0 : i32
    %c0_i32_0 = arith.constant 0 : i32
    return %1, %c0_i32 : i32, i32
  }
  func.func @transform_1(%arg0: i32, %arg1: i32) -> (i32, i32) {
    %c1_i32 = arith.constant 1 : i32
    %0 = arith.muli %arg0, %c1_i32 : i32
    %1 = arith.addi %0, %arg1 : i32
    %c0_i32 = arith.constant 0 : i32
    %c0_i32_0 = arith.constant 0 : i32
    return %1, %c0_i32 : i32, i32
  }
  func.func @transform_2(%arg0: i32, %arg1: i32) -> (i32, i32, i32) {
    %c0_i32 = arith.constant 0 : i32
    %c0_i32_0 = arith.constant 0 : i32
    %c0_i32_1 = arith.constant 0 : i32
    return %arg0, %c0_i32, %c0_i32_0 : i32, i32, i32
  }
}

</mosaic_0001>

<llo_original>
// kernel: _pose_metric_stats_pallas.1
$region0: #{_pose_metric_stats_pallas.1}
  #allocation0 [shape = 'u32[]', space=smem, size = 0x4, offset = 0x4, fixed_abs, tag = 'smem constant byte address 0x4 - core index']
  #allocation1 [shape = 'u32[144,128]{1,0:T(1,128)}', space=vmem, size = 0x12000, scoped, tag = 'internal scratch']
  %s0 = inlined_call_operand.vmem [shape: f32[16,1152], index: 0, kind: input, shape index: {}]
  %s1 = inlined_call_operand.vmem [shape: f32[16,1152], index: 1, kind: input, shape index: {}]
  %s2 = inlined_call_operand.vmem [shape: f32[2,1,1152], index: 2, kind: output, shape index: {}]
  %s3 = sld [smem:[#allocation0]]
  $region45: #{_pose_metric_stats_pallas.1} parent=0
    _
  %s5 = ssub.s32 1, %s3
  %s6 = scalar_select 0, %s5, %s3
  loop: start=0, step=1, limit=4
  $region2: #{_pose_metric_stats_pallas.1} parent=0 // loop_pre_header
    _
  $region3: #{_pose_metric_stats_pallas.1} parent=0 // loop_header
    %s8 = sphi 0, %s12
    %p9 = scmp.ge.s32.totalorder %s8, 4
    %s15 = sphi 0, %s27
    %s16 = sphi 0, %s23
    %s17 = sphi 0, %s15
    %s18 = sphi 0, %s16
    %s19 = sphi 0, %s17
    %s20 = sphi 0, %s18
    %s32 = sphi 0, %s34
    %s35 = sphi 0, %s32
    %s36 = sphi 0, %s35
    %s52 = sphi 0, %s36
    %s60 = sphi 0, %s62
    %s63 = sphi 0, %s60
    %s64 = sphi 0, %s63
    %s80 = sphi 0, %s64
    %s86 = sphi 0, %s88
    %s89 = sphi 0, %s86
    %s90 = sphi 0, %s89
    %s106 = sphi 0, %s90
  $region4: #{_pose_metric_stats_pallas.1} parent=0 // loop_header_branch
    %11 = sbr.rel (%p9) target = $region8
  $region5: #{_pose_metric_stats_pallas.1} parent=0 // loop_body
    %s13 = ssub.s32 %s8, 1
    %s14 = ssub.s32 %s8, 2
    %s21 = sadd.s32 1, %s16
    %p22 = scmp.ge.s32.totalorder %s21, 1
    %s23 = scalar_select %p22, 0, %s21
    %s24 = sadd.s32 1, %s15
    %s25 = scalar_select %p22, %s24, %s15
    %p26 = scmp.ge.s32.totalorder %s25, 2
    %s27 = scalar_select %p26, 0, %s25
    %s28 = sadd.s32 %s15, %s16
    %s29 = sadd.s32 %s27, %s23
    %s30 = ssub.s32 %s28, %s29
    %p31 = scmp.eq.s32.totalorder %s30, 0
    %s33 = sadd.s32 %s32, 1
    %s34 = scalar_select %p31, %s32, %s33
    %p37 = pneg %p31
    %p38 = scmp.eq.s32.totalorder %s8, 1
    %p39 = por %p37, %p38
    %p40 = scmp.ne.s32.totalorder %s32, %s35
    %p41 = scmp.eq.s32.totalorder %s8, 0
    %p42 = por %p40, %p41
    %p43 = scmp.ne.s32.totalorder %s32, %s35
    %p44 = scmp.eq.s32.totalorder %s13, 1
    %p45 = por %p43, %p44
    %p46 = scmp.ne.s32.totalorder %s35, %s36
    %p47 = scmp.eq.s32.totalorder %s13, 0
    %p48 = por %p46, %p47
    %p49 = scmp.ne.s32.totalorder %s35, %s36
    %p50 = scmp.eq.s32.totalorder %s14, 1
    %p51 = por %p49, %p50
    %p53 = scmp.ne.s32.totalorder %s36, %s52
    %p54 = scmp.eq.s32.totalorder %s14, 0
    %p55 = por %p53, %p54
    %s56 = sadd.s32 %s15, %s16
    %s57 = sadd.s32 %s27, %s23
    %s58 = ssub.s32 %s56, %s57
    %p59 = scmp.eq.s32.totalorder %s58, 0
    %s61 = sadd.s32 %s60, 1
    %s62 = scalar_select %p59, %s60, %s61
    %p65 = pneg %p59
    %p66 = scmp.eq.s32.totalorder %s8, 1
    %p67 = por %p65, %p66
    %p68 = scmp.ne.s32.totalorder %s60, %s63
    %p69 = scmp.eq.s32.totalorder %s8, 0
    %p70 = por %p68, %p69
    %p71 = scmp.ne.s32.totalorder %s60, %s63
    %p72 = scmp.eq.s32.totalorder %s13, 1
    %p73 = por %p71, %p72
    %p74 = scmp.ne.s32.totalorder %s63, %s64
    %p75 = scmp.eq.s32.totalorder %s13, 0
    %p76 = por %p74, %p75
    %p77 = scmp.ne.s32.totalorder %s63, %s64
    %p78 = scmp.eq.s32.totalorder %s14, 1
    %p79 = por %p77, %p78
    %p81 = scmp.ne.s32.totalorder %s64, %s80
    %p82 = scmp.eq.s32.totalorder %s14, 0
    %p83 = por %p81, %p82
    %s84 = ssub.s32 %s15, %s27
    %p85 = scmp.eq.s32.totalorder %s84, 0
    %s87 = sadd.s32 %s86, 1
    %s88 = scalar_select %p85, %s86, %s87
    %p91 = pneg %p85
    %p92 = scmp.eq.s32.totalorder %s8, 1
    %p93 = por %p91, %p92
    %p94 = scmp.ne.s32.totalorder %s86, %s89
    %p95 = scmp.eq.s32.totalorder %s8, 0
    %p96 = por %p94, %p95
    %p97 = scmp.ne.s32.totalorder %s86, %s89
    %p98 = scmp.eq.s32.totalorder %s13, 1
    %p99 = por %p97, %p98
    %p100 = scmp.ne.s32.totalorder %s89, %s90
    %p101 = scmp.eq.s32.totalorder %s13, 0
    %p102 = por %p100, %p101
    %p103 = scmp.ne.s32.totalorder %s89, %s90
    %p104 = scmp.eq.s32.totalorder %s14, 1
    %p105 = por %p103, %p104
    %p107 = scmp.ne.s32.totalorder %s90, %s106
    %p108 = scmp.eq.s32.totalorder %s14, 0
    %p109 = por %p107, %p108
    %p110 = scmp.le.s32.totalorder 1, %s8
    %p111 = scmp.lt.s32.totalorder %s8, 3
    %p112 = pnand %p110, %p111
    %p113 = pneg %p112
    // Predicated region
    $region9: #{_pose_metric_stats_pallas.1} parent=5 // pred_check
      _
    $region10: #{_pose_metric_stats_pallas.1} parent=5 // pred_check_branch
      %115 = sbr.rel (%p112) target = $region12
    $region11: #{_pose_metric_stats_pallas.1} parent=5 // pred_region
      %s116 = ssub.s32 %s8, 1
    $region12: #{_pose_metric_stats_pallas.1} parent=5 // pred_fallthru
      _
    %p117 = scmp.lt.s32.totalorder %s8, 2
    // Predicated region
    $region13: #{_pose_metric_stats_pallas.1} parent=5 // pred_check
      %p118 = pneg %p117
    $region14: #{_pose_metric_stats_pallas.1} parent=5 // pred_check_branch
      %120 = sbr.rel (%p118) target = $region16
    $region15: #{_pose_metric_stats_pallas.1} parent=5 // pred_region
      // Predicated region
      $region17: #{_pose_metric_stats_pallas.1} parent=15 // pred_check
        %p121 = pneg %p42
      $region18: #{_pose_metric_stats_pallas.1} parent=15 // pred_check_branch
        %123 = sbr.rel (%p121) target = $region20
      $region19: #{_pose_metric_stats_pallas.1} parent=15 // pred_region
        %s124 = sadd.s32 %s15, %s16
        %p125 = scmp.lt.s32.totalorder %s124, 1
        %s126 = scalar_select %p125, %s124, 1
        %s127 = smul.addr %s126, 9
        %s128 = smul.addr %s127, 8
        %s129 = scalar_lea.vmem %s0, %s128
        %s130 = sadd.s32 %s15, %s16
      $region20: #{_pose_metric_stats_pallas.1} parent=15 // pred_fallthru
        _
      // Predicated region
      $region21: #{_pose_metric_stats_pallas.1} parent=15 // pred_check
        %p131 = pneg %p70
      $region22: #{_pose_metric_stats_pallas.1} parent=15 // pred_check_branch
        %133 = sbr.rel (%p131) target = $region24
      $region23: #{_pose_metric_stats_pallas.1} parent=15 // pred_region
        %s134 = sadd.s32 %s15, %s16
        %p135 = scmp.lt.s32.totalorder %s134, 1
        %s136 = scalar_select %p135, %s134, 1
        %s137 = smul.addr %s136, 9
        %s138 = smul.addr %s137, 8
        %s139 = scalar_lea.vmem %s1, %s138
        %s140 = sadd.s32 %s15, %s16
      $region24: #{_pose_metric_stats_pallas.1} parent=15 // pred_fallthru
        _
    $region16: #{_pose_metric_stats_pallas.1} parent=5 // pred_fallthru
      _
    %p141 = scmp.le.s32.totalorder 1, %s8
    %p142 = scmp.lt.s32.totalorder %s8, 3
    %p143 = pnand %p141, %p142
    %p144 = pneg %p143
    // Predicated region
    $region25: #{_pose_metric_stats_pallas.1} parent=5 // pred_check
      _
    $region26: #{_pose_metric_stats_pallas.1} parent=5 // pred_check_branch
      %146 = sbr.rel (%p143) target = $region28
    $region27: #{_pose_metric_stats_pallas.1} parent=5 // pred_region
      %s147 = ssub.s32 %s8, 1
      %s148 = sadd.s32 %s17, %s18
      %p149 = scmp.lt.s32.totalorder %s148, 1
      %s150 = scalar_select %p149, %s148, 1
      %s151 = smul.addr %s150, 9
      %s152 = smul.addr %s151, 8
      %s153 = scalar_lea.vmem %s0, %s152
      %p154 = pneg %p48
      %p155 = pneg %p45
      %s156 = sadd.s32 %s17, %s18
      %p157 = scmp.lt.s32.totalorder %s156, 1
      %s158 = scalar_select %p157, %s156, 1
      %s159 = smul.addr %s158, 9
      %s160 = smul.addr %s159, 8
      %s161 = scalar_lea.vmem %s1, %s160
      %p162 = pneg %p76
      %p163 = pneg %p73
      %p164 = pneg %p102
      %p165 = pneg %p99
      %p166 = scmp.lt.s32.totalorder %s17, 1
      %s167 = scalar_select %p166, %s17, 1
      %s168 = smul.addr %s167, 9
      %s169 = scalar_lea.vmem %s2, %s168
      %s170 = sadd.s32 %s17, %s18
      %p171 = scmp.lt.s32.totalorder %s170, 1
      %s172 = scalar_select %p171, %s170, 1
      %s173 = smul.addr %s172, 9
      %s174 = smul.addr %s173, 8
      %s175 = scalar_lea.vmem %s0, %s174
      %s176 = sadd.s32 %s17, %s18
      %s177 = sadd.s32 %s17, %s18
      %p178 = scmp.lt.s32.totalorder %s177, 1
      %s179 = scalar_select %p178, %s177, 1
      %s180 = smul.addr %s179, 9
      %s181 = smul.addr %s180, 8
      %s182 = scalar_lea.vmem %s1, %s181
      %s183 = sadd.s32 %s17, %s18
      %p184 = scmp.lt.s32.totalorder %s17, 1
      %s185 = scalar_select %p184, %s17, 1
      %s186 = smul.addr %s185, 9
      %s187 = scalar_lea.vmem %s2, %s186
      %p188 = scmp.eq.s32.totalorder %s18, 0
      // Predicated region
      $region29: #{_pose_metric_stats_pallas.1} parent=27 // pred_check
        %p189 = pneg %p188
      $region30: #{_pose_metric_stats_pallas.1} parent=27 // pred_check_branch
        %191 = sbr.rel (%p189) target = $region32
      $region31: #{_pose_metric_stats_pallas.1} parent=27 // pred_region
        %192 = vst [vmem:[%s187] sm:$0xff] 0.0
        %v193 = vlaneseq
        %vm194 = vcmp.ge.s32.totalorder %v193, 0
        %vm195 = vcmp.lt.s32.totalorder %v193, 128
        %vm196 = vmand %vm194, %vm195
        %197 = vst.msk [vmem:[%s187 + $0x8] sm:$0x1] %vm196, 0.0
      $region32: #{_pose_metric_stats_pallas.1} parent=27 // pred_fallthru
        _
      %v198 = vld [vmem:[%s175] sm:$0xff]
      %v199 = vld [vmem:[%s175 + $0x8] sm:$0xff]
      %v200 = vld [vmem:[%s175 + $0x10] sm:$0xff]
      %v201 = vld [vmem:[%s175 + $0x18] sm:$0xff]
      %v202 = vld [vmem:[%s175 + $0x20] sm:$0xff]
      %v203 = vld [vmem:[%s175 + $0x28] sm:$0xff]
      %v204 = vld [vmem:[%s175 + $0x30] sm:$0xff]
      %v205 = vld [vmem:[%s175 + $0x38] sm:$0xff]
      %v206 = vld [vmem:[%s175 + $0x40] sm:$0xff]
      %v207 = vld [vmem:[%s182] sm:$0xff]
      %v208 = vld [vmem:[%s182 + $0x8] sm:$0xff]
      %v209 = vld [vmem:[%s182 + $0x10] sm:$0xff]
      %v210 = vld [vmem:[%s182 + $0x18] sm:$0xff]
      %v211 = vld [vmem:[%s182 + $0x20] sm:$0xff]
      %v212 = vld [vmem:[%s182 + $0x28] sm:$0xff]
      %v213 = vld [vmem:[%s182 + $0x30] sm:$0xff]
      %v214 = vld [vmem:[%s182 + $0x38] sm:$0xff]
      %v215 = vld [vmem:[%s182 + $0x40] sm:$0xff]
      %v216 = vsub.f32 %v198, %v207
      %v217 = vsub.f32 %v199, %v208
      %v218 = vsub.f32 %v200, %v209
      %v219 = vsub.f32 %v201, %v210
      %v220 = vsub.f32 %v202, %v211
      %v221 = vsub.f32 %v203, %v212
      %v222 = vsub.f32 %v204, %v213
      %v223 = vsub.f32 %v205, %v214
      %v224 = vsub.f32 %v206, %v215
      %v225 = vand.u32 2147483647, %v216
      %v226 = vand.u32 2147483647, %v217
      %v227 = vand.u32 2147483647, %v218
      %v228 = vand.u32 2147483647, %v219
      %v229 = vand.u32 2147483647, %v220
      %v230 = vand.u32 2147483647, %v221
      %v231 = vand.u32 2147483647, %v222
      %v232 = vand.u32 2147483647, %v223
      %v233 = vand.u32 2147483647, %v224
      %v234 = vld [vmem:[%s187] sm:$0xff]
      %v235 = vld [vmem:[%s187 + $0x8] sm:$0x1]
      %v236 = vrot.slane %v225, 4
      %v237 = vadd.f32 %v225, %v236
      %v238 = vrot.slane %v237, 2
      %v239 = vadd.f32 %v237, %v238
      %v240 = vrot.slane %v239, 1
      %v241 = vadd.f32 %v239, %v240
      %v242 = vrot.slane %v226, 4
      %v243 = vadd.f32 %v226, %v242
      %v244 = vrot.slane %v243, 2
      %v245 = vadd.f32 %v243, %v244
      %v246 = vrot.slane %v245, 1
      %v247 = vadd.f32 %v245, %v246
      %v248 = vrot.slane %v227, 4
      %v249 = vadd.f32 %v227, %v248
      %v250 = vrot.slane %v249, 2
      %v251 = vadd.f32 %v249, %v250
      %v252 = vrot.slane %v251, 1
      %v253 = vadd.f32 %v251, %v252
      %v254 = vrot.slane %v228, 4
      %v255 = vadd.f32 %v228, %v254
      %v256 = vrot.slane %v255, 2
      %v257 = vadd.f32 %v255, %v256
      %v258 = vrot.slane %v257, 1
      %v259 = vadd.f32 %v257, %v258
      %v260 = vrot.slane %v229, 4
      %v261 = vadd.f32 %v229, %v260
      %v262 = vrot.slane %v261, 2
      %v263 = vadd.f32 %v261, %v262
      %v264 = vrot.slane %v263, 1
      %v265 = vadd.f32 %v263, %v264
      %v266 = vrot.slane %v230, 4
      %v267 = vadd.f32 %v230, %v266
      %v268 = vrot.slane %v267, 2
      %v269 = vadd.f32 %v267, %v268
      %v270 = vrot.slane %v269, 1
      %v271 = vadd.f32 %v269, %v270
      %v272 = vrot.slane %v231, 4
      %v273 = vadd.f32 %v231, %v272
      %v274 = vrot.slane %v273, 2
      %v275 = vadd.f32 %v273, %v274
      %v276 = vrot.slane %v275, 1
      %v277 = vadd.f32 %v275, %v276
      %v278 = vrot.slane %v232, 4
      %v279 = vadd.f32 %v232, %v278
      %v280 = vrot.slane %v279, 2
      %v281 = vadd.f32 %v279, %v280
      %v282 = vrot.slane %v281, 1
      %v283 = vadd.f32 %v281, %v282
      %v284 = vrot.slane %v233, 4
      %v285 = vadd.f32 %v233, %v284
      %v286 = vrot.slane %v285, 2
      %v287 = vadd.f32 %v285, %v286
      %v288 = vrot.slane %v287, 1
      %v289 = vadd.f32 %v287, %v288
      %v299 = vcombine.low %v241, %v247
      %v300 = vcombine.low %v253, %v259
      %v301 = vcombine.low %v265, %v271
      %v302 = vcombine.low %v277, %v283
      %v304 = vunpack.c.l.s4 1966171168
      %v305 = vunpack.c.0.s8 %v304
      %v306 = vlaneseq
      %v307 = vshrl.u32 %v306, 7
      %v308 = vsub.s32 %v305, %v307
      %v309 = vrot.slane %v299, %v308
      %v311 = vunpack.c.l.s4 1966171168
      %v312 = vunpack.c.0.s8 %v311
      %v313 = vlaneseq
      %v314 = vshrl.u32 %v313, 7
      %v315 = vsub.s32 %v312, %v314
      %v316 = vrot.slane %v300, %v315
      %v318 = vunpack.c.l.s4 1966171168
      %v319 = vunpack.c.0.s8 %v318
      %v320 = vlaneseq
      %v321 = vshrl.u32 %v320, 7
      %v322 = vsub.s32 %v319, %v321
      %v323 = vrot.slane %v301, %v322
      %v325 = vunpack.c.l.s4 1966171168
      %v326 = vunpack.c.0.s8 %v325
      %v327 = vlaneseq
      %v328 = vshrl.u32 %v327, 7
      %v329 = vsub.s32 %v326, %v328
      %v330 = vrot.slane %v302, %v329
      %v331 = vcombine.low %v309, %v316
      %v332 = vcombine.low %v323, %v330
      %v334 = vunpack.c.l.s4 1966171168
      %v335 = vunpack.c.0.s8 %v334
      %v336 = vlaneseq
      %v337 = vshrl.u32 %v336, 7
      %v338 = vsub.s32 %v335, %v337
      %v339 = vrot.slane %v331, %v338
      %v341 = vunpack.c.l.s4 1966171168
      %v342 = vunpack.c.0.s8 %v341
      %v343 = vlaneseq
      %v344 = vshrl.u32 %v343, 7
      %v345 = vsub.s32 %v342, %v344
      %v346 = vrot.slane %v332, %v345
      %v347 = vcombine.low %v339, %v346
      %v349 = vunpack.c.l.s4 1966171168
      %v350 = vunpack.c.0.s8 %v349
      %v351 = vlaneseq
      %v352 = vshrl.u32 %v351, 7
      %v353 = vsub.s32 %v350, %v352
      %v354 = vrot.slane %v289, %v353
      %v356 = vunpack.c.l.s4 1966171168
      %v357 = vunpack.c.0.s8 %v356
      %v358 = vlaneseq
      %v359 = vshrl.u32 %v358, 7
      %v360 = vsub.s32 %v357, %v359
      %v361 = vrot.slane %v354, %v360
      %v364 = vadd.f32 %v234, %v347
      %v365 = vadd.f32 %v235, %v361
      %366 = vst [vmem:[%s187] sm:$0xff] %v364
      %v367 = vlaneseq
      %vm368 = vcmp.ge.s32.totalorder %v367, 0
      %vm369 = vcmp.lt.s32.totalorder %v367, 128
      %vm370 = vmand %vm368, %vm369
      %371 = vst.msk [vmem:[%s187 + $0x8] sm:$0x1] %vm370, %v365
      %p372 = scmp.lt.s32.totalorder %s17, 1
      %s373 = scalar_select %p372, %s17, 1
      %s374 = smul.addr %s373, 9
      %s375 = scalar_lea.vmem %s2, %s374
      // Predicated region
      $region33: #{_pose_metric_stats_pallas.1} parent=27 // pred_check
        %p376 = pneg %p99
      $region34: #{_pose_metric_stats_pallas.1} parent=27 // pred_check_branch
        %378 = sbr.rel (%p376) target = $region36
      $region35: #{_pose_metric_stats_pallas.1} parent=27 // pred_region
        _
      $region36: #{_pose_metric_stats_pallas.1} parent=27 // pred_fallthru
        _
    $region28: #{_pose_metric_stats_pallas.1} parent=5 // pred_fallthru
      _
    %p379 = scmp.le.s32.totalorder 2, %s8
    // Predicated region
    $region37: #{_pose_metric_stats_pallas.1} parent=5 // pred_check
      %p380 = pneg %p379
    $region38: #{_pose_metric_stats_pallas.1} parent=5 // pred_check_branch
      %382 = sbr.rel (%p380) target = $region40
    $region39: #{_pose_metric_stats_pallas.1} parent=5 // pred_region
      %s383 = ssub.s32 %s8, 2
      // Predicated region
      $region41: #{_pose_metric_stats_pallas.1} parent=39 // pred_check
        %p384 = pneg %p105
      $region42: #{_pose_metric_stats_pallas.1} parent=39 // pred_check_branch
        %386 = sbr.rel (%p384) target = $region44
      $region43: #{_pose_metric_stats_pallas.1} parent=39 // pred_region
        %p387 = scmp.lt.s32.totalorder %s19, 1
        %s388 = scalar_select %p387, %s19, 1
        %s389 = smul.addr %s388, 9
        %s390 = scalar_lea.vmem %s2, %s389
      $region44: #{_pose_metric_stats_pallas.1} parent=39 // pred_fallthru
        _
    $region40: #{_pose_metric_stats_pallas.1} parent=5 // pred_fallthru
      _
  $region6: #{_pose_metric_stats_pallas.1} parent=0 // loop_footer
    %s12 = sadd.s32 1, %s8
  $region7: #{_pose_metric_stats_pallas.1} parent=0 // loop_footer_branch
    %7 = sbr.rel target = $region3
  $region8: #{_pose_metric_stats_pallas.1} parent=0 // loop_exit
    _

</llo_original>
